<compile_context>
chip_gen: v5e
topology: v5e:2x2
jax: 0.10.0
libtpu: 0.0.40
codegen_flags: <defaults>
</compile_context>

<pallas_src>
import jax
import jax.numpy as jnp
from jax import lax
from jax.experimental import pallas as pl
from jax.experimental.pallas import tpu as pltpu

LANE = 128


def _round_up(v, m):
    return ((v + m - 1) // m) * m


# ------------------------------------------------------------------------------------
# Host-side metadata.
# The reference's slicing quirk is preserved: the slice START is the patch INDEX
# (rows i:(i+1)*psx, cols j:(j+1)*psy), so patches overlap and have variable size.
# ------------------------------------------------------------------------------------
def _patch_bounds(C, H, W, patch_nb):
    psx, psy = H // patch_nb, W // patch_nb
    rows = []
    for i in range(patch_nb):
        for j in range(patch_nb):
            rs, re = i, (i + 1) * psx
            cs, ce = j, (j + 1) * psy
            rows.append([rs, re, cs, ce, C * (re - rs) * (ce - cs)])   # last col = a*b*c*d
    return jnp.asarray(rows, dtype=jnp.int32)                          # (P, 5) int32


def _flat_feature_stream(x, tk):
    """x (1,C,H,W) -> bf16 (C, HWpad) plus int32 row/col index streams (1, HWpad)."""
    a, C, H, W = x.shape
    assert a == 1, "reference StyleLoss only works for batch size 1"
    hw = H * W
    hw_pad = _round_up(hw, tk)
    x2 = x.reshape(C, hw).astype(jnp.bfloat16)
    if hw_pad != hw:
        x2 = jnp.pad(x2, ((0, 0), (0, hw_pad - hw)))
    pos = jnp.arange(hw_pad, dtype=jnp.int32)
    h_idx = (pos // W).reshape(1, hw_pad)     # padded tail -> h >= H, always masked out
    w_idx = (pos % W).reshape(1, hw_pad)
    return x2, h_idx, w_idx, hw_pad


def _tile_and_vmem(C, HW, n_patches, n_targets):
    """Pick a wide lane-aligned K tile that fits VMEM, and an explicit VMEM limit."""
    tk = _round_up(max(512, (2 << 20) // max(2 * C, 1)), LANE)   # ~2 MiB bf16 x block
    tk = max(LANE, min(tk, 4096, _round_up(HW, LANE)))

    def vmem_bytes(t):
        x_buf = 2 * C * t * 2                    # bf16 x tile, double-buffered
        idx_buf = 2 * 2 * t * 4                  # h_idx + w_idx tiles, double-buffered
        acc = n_patches * C * C * 4              # f32 gram accumulator (scratch)
        tgt = 2 * n_targets * C * C * 4          # resident target grams
        return x_buf + idx_buf + acc + tgt + (1 << 20)

    while vmem_bytes(tk) > (48 << 20) and tk > LANE:
        tk = max(LANE, _round_up(tk // 2, LANE))
    # TODO(synk): if the (P,C,C) accumulator alone exceeds the budget (very large C),
    # tile the patch axis (also enables the v7x dual-TensorCore split).
    vmem_limit = int(min(max(vmem_bytes(tk), 32 << 20), 64 << 20))
    return tk, vmem_limit


# ------------------------------------------------------------------------------------
# Shared in-kernel building blocks.
# ------------------------------------------------------------------------------------
def _sum2(v):
    # full reduction of a 2-D tile to a (1, 1) value (stay 2-D for Mosaic)
    return jnp.sum(jnp.sum(v, axis=1, keepdims=True), axis=0, keepdims=True)


def _accumulate_masked_grams(bounds_ref, x_ref, h_ref, w_ref, acc_ref, n_patches):
    """One K step: acc[p] += (mask_p * f) @ f^T for every patch p (f streamed once)."""
    k = pl.program_id(0)

    @pl.when(k == 0)
    def _init():
        acc_ref[...] = jnp.zeros_like(acc_ref)

    f = x_ref[...]                                       # (C, tk)  bf16
    h = h_ref[...]                                       # (1, tk)  int32 row ids
    w = w_ref[...]                                       # (1, tk)  int32 col ids
    for p in range(n_patches):                           # static unroll (P = 25 / 4)
        m = ((h >= bounds_ref[p, 0]) & (h < bounds_ref[p, 1]) &
             (w >= bounds_ref[p, 2]) & (w < bounds_ref[p, 3]))
        fm = jnp.where(m, f, jnp.zeros_like(f))          # mask ONE operand only
        acc_ref[p] = acc_ref[p] + lax.dot_general(
            fm, f, (((1,), (1,)), ((), ())),             # (C,tk) x (C,tk) -> (C,C)
            preferred_element_type=jnp.float32)


# ------------------------------------------------------------------------------------
# Kernel 1 (init-time): per-patch target gram matrices, K-tiled over the streamed map.
# ------------------------------------------------------------------------------------
def _make_target_gram_kernel(n_patches):
    def kernel(bounds_ref, x_ref, h_ref, w_ref, out_ref, acc_ref):
        _accumulate_masked_grams(bounds_ref, x_ref, h_ref, w_ref, acc_ref, n_patches)

        @pl.when(pl.program_id(0) == pl.num_programs(0) - 1)
        def _finalize():
            for p in range(n_patches):
                inv_area = 1.0 / bounds_ref[p, 4].astype(jnp.float32)
                out_ref[p] = acc_ref[p] * inv_area
    return kernel


def _patch_grams(x, bounds):
    _, C, H, W = x.shape
    P = int(bounds.shape[0])
    tk, vmem_limit = _tile_and_vmem(C, H * W, P, 0)
    x2, h_idx, w_idx, hw_pad = _flat_feature_stream(x, tk)
    return pl.pallas_call(
        _make_target_gram_kernel(P),
        out_shape=jax.ShapeDtypeStruct((P, C, C), jnp.float32),
        grid_spec=pltpu.PrefetchScalarGridSpec(
            num_scalar_prefetch=1,
            grid=(hw_pad // tk,),
            in_specs=[
                pl.BlockSpec((C, tk), lambda k, b: (0, k)),      # streamed bf16 tiles
                pl.BlockSpec((1, tk), lambda k, b: (0, k)),      # row-index stream
                pl.BlockSpec((1, tk), lambda k, b: (0, k)),      # col-index stream
            ],
            out_specs=pl.BlockSpec((P, C, C), lambda k, b: (0, 0, 0)),
            scratch_shapes=[pltpu.VMEM((P, C, C), jnp.float32)],
        ),
        compiler_params=pltpu.CompilerParams(
            dimension_semantics=("arbitrary",),
            vmem_limit_bytes=vmem_limit),
    )(bounds, x2, h_idx, w_idx)


# ------------------------------------------------------------------------------------
# Kernel 2 (forward, fused): per-patch grams + exact IP top-1 search + loss.
# The (25, C, C) grams live only in a VMEM scratch; only a (1,1) scalar leaves the
# kernel.  Selection uses the inner product (strict '>' keeps the first maximum, as
# faiss does); the distance is computed directly on the selected target (no
# cancellation-prone norm identity, no target norms needed).
# ------------------------------------------------------------------------------------
def _make_style_loss_kernel(n_patches, n_targets):
    def kernel(bounds_ref, x_ref, h_ref, w_ref, t_ref, loss_ref, acc_ref):
        _accumulate_masked_grams(bounds_ref, x_ref, h_ref, w_ref, acc_ref, n_patches)

        @pl.when(pl.program_id(0) == pl.num_programs(0) - 1)
        def _finalize():
            # TODO(synk): at large C, compute the (P, PT) inner products with one MXU
            # contraction instead of VPU multiply-reduce passes.
            loss = jnp.zeros((1, 1), jnp.float32)
            for p in range(n_patches):
                inv_area = 1.0 / bounds_ref[p, 4].astype(jnp.float32)
                g = acc_ref[p] * inv_area                    # (C, C) scaled gram
                best_s = _sum2(g * t_ref[0])                 # (1, 1) inner product
                best_t = t_ref[0]
                for j in range(1, n_targets):
                    s_j = _sum2(g * t_ref[j])
                    take = s_j > best_s                      # strict > == first max
                    best_t = jnp.where(take, t_ref[j], best_t)
                    best_s = jnp.where(take, s_j, best_s)
                diff = g - best_t
                loss = loss + jnp.sqrt(_sum2(diff * diff))
            loss_ref[...] = loss
    return kernel


def _fused_style_loss(x, bounds, target3):
    _, C, H, W = x.shape
    P = int(bounds.shape[0])
    PT = int(target3.shape[0])
    tk, vmem_limit = _tile_and_vmem(C, H * W, P, PT)
    x2, h_idx, w_idx, hw_pad = _flat_feature_stream(x, tk)
    out = pl.pallas_call(
        _make_style_loss_kernel(P, PT),
        out_shape=jax.ShapeDtypeStruct((1, 1), jnp.float32),
        grid_spec=pltpu.PrefetchScalarGridSpec(
            num_scalar_prefetch=1,
            grid=(hw_pad // tk,),
            in_specs=[
                pl.BlockSpec((C, tk), lambda k, b: (0, k)),        # streamed bf16 tiles
                pl.BlockSpec((1, tk), lambda k, b: (0, k)),        # row-index stream
                pl.BlockSpec((1, tk), lambda k, b: (0, k)),        # col-index stream
                pl.BlockSpec((PT, C, C), lambda k, b: (0, 0, 0)),  # resident target grams
            ],
            out_specs=pl.BlockSpec((1, 1), lambda k, b: (0, 0)),
            scratch_shapes=[pltpu.VMEM((P, C, C), jnp.float32)],
        ),
        compiler_params=pltpu.CompilerParams(
            dimension_semantics=("arbitrary",),
            vmem_limit_bytes=vmem_limit),
    )(bounds, x2, h_idx, w_idx, target3)
    return out[0, 0]


# ------------------------------------------------------------------------------------
# StyleLoss module (JAX/Pallas port)
# ------------------------------------------------------------------------------------
class StyleLoss:
    def __init__(self, target_feature):
        a, C, H, W = target_feature.shape
        assert a == 1, "reference StyleLoss only works for batch size 1"
        # faiss GpuIndexFlatIP.add(target) is replaced by keeping the target grams on
        # device; the exact inner-product top-1 search runs inside the fused kernel.
        bounds_t = _patch_bounds(C, H, W, patch_nb=2)
        t3 = _patch_grams(target_feature, bounds_t)            # (4, C, C)
        self._target3 = t3
        self.target = t3.reshape(t3.shape[0], C * C)           # (4, C*C), as in ref
        # NOTE: the reference's `for i in range(8): torch.cat(...)` discards its result
        # (a no-op) and is intentionally omitted.

    def __call__(self, x):
        a, C, H, W = x.shape
        assert a == 1, "reference StyleLoss only works for batch size 1"
        bounds = _patch_bounds(C, H, W, patch_nb=5)            # 25 patches
        self.loss = _fused_style_loss(x, bounds, self._target3)
        return x                                               # forward returns input


# ------------------------------------------------------------------------------------
# Pure-JAX reference (sanity check, full f32)
# ------------------------------------------------------------------------------------
def _ref_gram_matrixes(x, patch_nb):
    a, C, H, W = x.shape
    psx, psy = H // patch_nb, W // patch_nb
    rows = []
    for i in range(patch_nb):
        for j in range(patch_nb):
            f = x[:, :, i:(i + 1) * psx, j:(j + 1) * psy]
            aa, bb, cc, dd = f.shape
            f2 = f.reshape(aa * bb, cc * dd)
            rows.append((f2 @ f2.T).reshape(aa * aa * bb * bb) / (aa * bb * cc * dd))
    return jnp.stack(rows)


def _ref_loss(x, target):
    G = _ref_gram_matrixes(x, 5)
    I = jnp.argmax(G @ target.T, axis=1)
    diff = G - target[I]
    return jnp.sum(jnp.sqrt(jnp.sum(diff * diff, axis=1)))


if __name__ == "__main__":
    key = jax.random.PRNGKey(0)
    k1, k2 = jax.random.split(key)
    # small NCHW feature maps; batch must be 1 (reference constraint)
    target_feature = jax.random.normal(k1, (1, 8, 16, 16), dtype=jnp.float32)
    x = jax.random.normal(k2, (1, 8, 16, 16), dtype=jnp.float32)

    style_loss = StyleLoss(target_feature)
    out = style_loss(x)

    out = jax.block_until_ready(out)
    loss = jax.block_until_ready(style_loss.loss)

    # sanity check against pure-f32 JAX reference (kernel streams features in bf16, so
    # the tolerance is set accordingly)
    ref_target = _ref_gram_matrixes(target_feature, 2)
    ref = jax.block_until_ready(_ref_loss(x, ref_target))
    assert out.shape == x.shape
    assert jnp.allclose(loss, ref, rtol=3e-2, atol=1e-2), (loss, ref)

    print("KERNEL_OK")
</pallas_src>

<mosaic_0001>
module attributes {stable_mosaic.version = 11 : i64} {
  func.func @kernel(%arg0: i32, %arg1: memref<4x5xi32, #tpu.memory_space<smem>>, %arg2: memref<8x256xbf16, #tpu.memory_space<vmem>>, %arg3: memref<1x256xi32, #tpu.memory_space<vmem>>, %arg4: memref<1x256xi32, #tpu.memory_space<vmem>>, %arg5: memref<4x8x8xf32, #tpu.memory_space<vmem>>, %arg6: memref<4x8x8xf32, #tpu.memory_space<vmem>>) attributes {dimension_semantics = [#tpu.dimension_semantics<arbitrary>], iteration_bounds = array<i64: 1>, scalar_prefetch = 1 : i64, scratch_operands = 1 : i64, tpu.core_type = #tpu.core_type<tc>, window_params = [{transform_indices = @transform_0, window_bounds = array<i64: 8, 256>}, {transform_indices = @transform_1, window_bounds = array<i64: 1, 256>}, {transform_indices = @transform_2, window_bounds = array<i64: 1, 256>}, {pipeline_mode = #tpu.pipeline_mode<synchronous>, transform_indices = @transform_3, window_bounds = array<i64: 4, 8, 8>}]} {
    %c0_i32 = arith.constant 0 : i32
    %0 = arith.cmpi eq, %arg0, %c0_i32 : i32
    %1 = arith.extui %0 : i1 to i32
    %c0_i32_0 = arith.constant 0 : i32
    %2 = arith.cmpi ne, %1, %c0_i32_0 : i32
    scf.if %2 {
      %cst_68 = arith.constant 0.000000e+00 : f32
      %113 = vector.broadcast %cst_68 : f32 to vector<4x8x8xf32>
      %c0_69 = arith.constant 0 : index
      %c0_70 = arith.constant 0 : index
      %c0_71 = arith.constant 0 : index
      %114 = vector.load %arg6[%c0_69, %c0_70, %c0_71] : memref<4x8x8xf32, #tpu.memory_space<vmem>>, vector<4x8x8xf32>
      tpu.vector_store %arg6[%c0_69, %c0_70, %c0_71], %113 {strides = array<i32>} : memref<4x8x8xf32, #tpu.memory_space<vmem>>, vector<4x8x8xf32>,
    } else {
    }
    %c0 = arith.constant 0 : index
    %c0_1 = arith.constant 0 : index
    %3 = vector.load %arg2[%c0, %c0_1] : memref<8x256xbf16, #tpu.memory_space<vmem>>, vector<8x256xbf16>
    %c0_2 = arith.constant 0 : index
    %c0_3 = arith.constant 0 : index
    %4 = vector.load %arg3[%c0_2, %c0_3] : memref<1x256xi32, #tpu.memory_space<vmem>>, vector<1x256xi32>
    %c0_4 = arith.constant 0 : index
    %c0_5 = arith.constant 0 : index
    %5 = vector.load %arg4[%c0_4, %c0_5] : memref<1x256xi32, #tpu.memory_space<vmem>>, vector<1x256xi32>
    %c0_6 = arith.constant 0 : index
    %c0_7 = arith.constant 0 : index
    %6 = memref.load %arg1[%c0_6, %c0_7] : memref<4x5xi32, #tpu.memory_space<smem>>
    %7 = vector.broadcast %6 : i32 to vector<1x256xi32>
    %8 = arith.cmpi sge, %4, %7 : vector<1x256xi32>
    %c0_8 = arith.constant 0 : index
    %c1 = arith.constant 1 : index
    %9 = memref.load %arg1[%c0_8, %c1] : memref<4x5xi32, #tpu.memory_space<smem>>
    %10 = vector.broadcast %9 : i32 to vector<1x256xi32>
    %11 = arith.cmpi slt, %4, %10 : vector<1x256xi32>
    %12 = arith.andi %8, %11 : vector<1x256xi1>
    %c0_9 = arith.constant 0 : index
    %c2 = arith.constant 2 : index
    %13 = memref.load %arg1[%c0_9, %c2] : memref<4x5xi32, #tpu.memory_space<smem>>
    %14 = vector.broadcast %13 : i32 to vector<1x256xi32>
    %15 = arith.cmpi sge, %5, %14 : vector<1x256xi32>
    %16 = arith.andi %12, %15 : vector<1x256xi1>
    %c0_10 = arith.constant 0 : index
    %c3 = arith.constant 3 : index
    %17 = memref.load %arg1[%c0_10, %c3] : memref<4x5xi32, #tpu.memory_space<smem>>
    %18 = vector.broadcast %17 : i32 to vector<1x256xi32>
    %19 = arith.cmpi slt, %5, %18 : vector<1x256xi32>
    %20 = arith.andi %16, %19 : vector<1x256xi1>
    %cst = arith.constant 0.000000e+00 : bf16
    %21 = vector.broadcast %cst : bf16 to vector<8x256xbf16>
    %22 = vector.shape_cast %20 : vector<1x256xi1> to vector<1x256xi1>
    %23 = vector.broadcast %22 : vector<1x256xi1> to vector<8x256xi1>
    %24 = arith.select %23, %3, %21 : vector<8x256xi1>, vector<8x256xbf16>
    %c0_11 = arith.constant 0 : index
    %c0_12 = arith.constant 0 : index
    %c0_13 = arith.constant 0 : index
    %25 = vector.load %arg6[%c0_11, %c0_12, %c0_13] : memref<4x8x8xf32, #tpu.memory_space<vmem>>, vector<1x8x8xf32>
    %26 = vector.shape_cast %25 : vector<1x8x8xf32> to vector<8x8xf32>
    %cst_14 = arith.constant dense<0.000000e+00> : vector<8x8xf32>
    %27 = tpu.matmul %24, %3, %cst_14 {dimension_numbers = #tpu.dot_dimension_numbers<[1], [1], [0], [0], [0, 0, 1, 0], [], []>} : vector<8x256xbf16>, vector<8x256xbf16>, vector<8x8xf32> -> vector<8x8xf32>
    %28 = arith.addf %26, %27 : vector<8x8xf32>
    %c0_15 = arith.constant 0 : index
    %c0_16 = arith.constant 0 : index
    %c0_17 = arith.constant 0 : index
    %29 = vector.load %arg6[%c0_15, %c0_16, %c0_17] : memref<4x8x8xf32, #tpu.memory_space<vmem>>, vector<1x8x8xf32>
    %30 = vector.shape_cast %29 : vector<1x8x8xf32> to vector<8x8xf32>
    %31 = vector.shape_cast %28 : vector<8x8xf32> to vector<1x8x8xf32>
    tpu.vector_store %arg6[%c0_15, %c0_16, %c0_17], %31 {strides = array<i32>} : memref<4x8x8xf32, #tpu.memory_space<vmem>>, vector<1x8x8xf32>,
    %c1_18 = arith.constant 1 : index
    %c0_19 = arith.constant 0 : index
    %32 = memref.load %arg1[%c1_18, %c0_19] : memref<4x5xi32, #tpu.memory_space<smem>>
    %33 = vector.broadcast %32 : i32 to vector<1x256xi32>
    %34 = arith.cmpi sge, %4, %33 : vector<1x256xi32>
    %c1_20 = arith.constant 1 : index
    %c1_21 = arith.constant 1 : index
    %35 = memref.load %arg1[%c1_20, %c1_21] : memref<4x5xi32, #tpu.memory_space<smem>>
    %36 = vector.broadcast %35 : i32 to vector<1x256xi32>
    %37 = arith.cmpi slt, %4, %36 : vector<1x256xi32>
    %38 = arith.andi %34, %37 : vector<1x256xi1>
    %c1_22 = arith.constant 1 : index
    %c2_23 = arith.constant 2 : index
    %39 = memref.load %arg1[%c1_22, %c2_23] : memref<4x5xi32, #tpu.memory_space<smem>>
    %40 = vector.broadcast %39 : i32 to vector<1x256xi32>
    %41 = arith.cmpi sge, %5, %40 : vector<1x256xi32>
    %42 = arith.andi %38, %41 : vector<1x256xi1>
    %c1_24 = arith.constant 1 : index
    %c3_25 = arith.constant 3 : index
    %43 = memref.load %arg1[%c1_24, %c3_25] : memref<4x5xi32, #tpu.memory_space<smem>>
    %44 = vector.broadcast %43 : i32 to vector<1x256xi32>
    %45 = arith.cmpi slt, %5, %44 : vector<1x256xi32>
    %46 = arith.andi %42, %45 : vector<1x256xi1>
    %cst_26 = arith.constant 0.000000e+00 : bf16
    %47 = vector.broadcast %cst_26 : bf16 to vector<8x256xbf16>
    %48 = vector.shape_cast %46 : vector<1x256xi1> to vector<1x256xi1>
    %49 = vector.broadcast %48 : vector<1x256xi1> to vector<8x256xi1>
    %50 = arith.select %49, %3, %47 : vector<8x256xi1>, vector<8x256xbf16>
    %c1_27 = arith.constant 1 : index
    %c0_28 = arith.constant 0 : index
    %c0_29 = arith.constant 0 : index
    %51 = vector.load %arg6[%c1_27, %c0_28, %c0_29] : memref<4x8x8xf32, #tpu.memory_space<vmem>>, vector<1x8x8xf32>
    %52 = vector.shape_cast %51 : vector<1x8x8xf32> to vector<8x8xf32>
    %cst_30 = arith.constant dense<0.000000e+00> : vector<8x8xf32>
    %53 = tpu.matmul %50, %3, %cst_30 {dimension_numbers = #tpu.dot_dimension_numbers<[1], [1], [0], [0], [0, 0, 1, 0], [], []>} : vector<8x256xbf16>, vector<8x256xbf16>, vector<8x8xf32> -> vector<8x8xf32>
    %54 = arith.addf %52, %53 : vector<8x8xf32>
    %c1_31 = arith.constant 1 : index
    %c0_32 = arith.constant 0 : index
    %c0_33 = arith.constant 0 : index
    %55 = vector.load %arg6[%c1_31, %c0_32, %c0_33] : memref<4x8x8xf32, #tpu.memory_space<vmem>>, vector<1x8x8xf32>
    %56 = vector.shape_cast %55 : vector<1x8x8xf32> to vector<8x8xf32>
    %57 = vector.shape_cast %54 : vector<8x8xf32> to vector<1x8x8xf32>
    tpu.vector_store %arg6[%c1_31, %c0_32, %c0_33], %57 {strides = array<i32>} : memref<4x8x8xf32, #tpu.memory_space<vmem>>, vector<1x8x8xf32>,
    %c2_34 = arith.constant 2 : index
    %c0_35 = arith.constant 0 : index
    %58 = memref.load %arg1[%c2_34, %c0_35] : memref<4x5xi32, #tpu.memory_space<smem>>
    %59 = vector.broadcast %58 : i32 to vector<1x256xi32>
    %60 = arith.cmpi sge, %4, %59 : vector<1x256xi32>
    %c2_36 = arith.constant 2 : index
    %c1_37 = arith.constant 1 : index
    %61 = memref.load %arg1[%c2_36, %c1_37] : memref<4x5xi32, #tpu.memory_space<smem>>
    %62 = vector.broadcast %61 : i32 to vector<1x256xi32>
    %63 = arith.cmpi slt, %4, %62 : vector<1x256xi32>
    %64 = arith.andi %60, %63 : vector<1x256xi1>
    %c2_38 = arith.constant 2 : index
    %c2_39 = arith.constant 2 : index
    %65 = memref.load %arg1[%c2_38, %c2_39] : memref<4x5xi32, #tpu.memory_space<smem>>
    %66 = vector.broadcast %65 : i32 to vector<1x256xi32>
    %67 = arith.cmpi sge, %5, %66 : vector<1x256xi32>
    %68 = arith.andi %64, %67 : vector<1x256xi1>
    %c2_40 = arith.constant 2 : index
    %c3_41 = arith.constant 3 : index
    %69 = memref.load %arg1[%c2_40, %c3_41] : memref<4x5xi32, #tpu.memory_space<smem>>
    %70 = vector.broadcast %69 : i32 to vector<1x256xi32>
    %71 = arith.cmpi slt, %5, %70 : vector<1x256xi32>
    %72 = arith.andi %68, %71 : vector<1x256xi1>
    %cst_42 = arith.constant 0.000000e+00 : bf16
    %73 = vector.broadcast %cst_42 : bf16 to vector<8x256xbf16>
    %74 = vector.shape_cast %72 : vector<1x256xi1> to vector<1x256xi1>
    %75 = vector.broadcast %74 : vector<1x256xi1> to vector<8x256xi1>
    %76 = arith.select %75, %3, %73 : vector<8x256xi1>, vector<8x256xbf16>
    %c2_43 = arith.constant 2 : index
    %c0_44 = arith.constant 0 : index
    %c0_45 = arith.constant 0 : index
    %77 = vector.load %arg6[%c2_43, %c0_44, %c0_45] : memref<4x8x8xf32, #tpu.memory_space<vmem>>, vector<1x8x8xf32>
    %78 = vector.shape_cast %77 : vector<1x8x8xf32> to vector<8x8xf32>
    %cst_46 = arith.constant dense<0.000000e+00> : vector<8x8xf32>
    %79 = tpu.matmul %76, %3, %cst_46 {dimension_numbers = #tpu.dot_dimension_numbers<[1], [1], [0], [0], [0, 0, 1, 0], [], []>} : vector<8x256xbf16>, vector<8x256xbf16>, vector<8x8xf32> -> vector<8x8xf32>
    %80 = arith.addf %78, %79 : vector<8x8xf32>
    %c2_47 = arith.constant 2 : index
    %c0_48 = arith.constant 0 : index
    %c0_49 = arith.constant 0 : index
    %81 = vector.load %arg6[%c2_47, %c0_48, %c0_49] : memref<4x8x8xf32, #tpu.memory_space<vmem>>, vector<1x8x8xf32>
    %82 = vector.shape_cast %81 : vector<1x8x8xf32> to vector<8x8xf32>
    %83 = vector.shape_cast %80 : vector<8x8xf32> to vector<1x8x8xf32>
    tpu.vector_store %arg6[%c2_47, %c0_48, %c0_49], %83 {strides = array<i32>} : memref<4x8x8xf32, #tpu.memory_space<vmem>>, vector<1x8x8xf32>,
    %c3_50 = arith.constant 3 : index
    %c0_51 = arith.constant 0 : index
    %84 = memref.load %arg1[%c3_50, %c0_51] : memref<4x5xi32, #tpu.memory_space<smem>>
    %85 = vector.broadcast %84 : i32 to vector<1x256xi32>
    %86 = arith.cmpi sge, %4, %85 : vector<1x256xi32>
    %c3_52 = arith.constant 3 : index
    %c1_53 = arith.constant 1 : index
    %87 = memref.load %arg1[%c3_52, %c1_53] : memref<4x5xi32, #tpu.memory_space<smem>>
    %88 = vector.broadcast %87 : i32 to vector<1x256xi32>
    %89 = arith.cmpi slt, %4, %88 : vector<1x256xi32>
    %90 = arith.andi %86, %89 : vector<1x256xi1>
    %c3_54 = arith.constant 3 : index
    %c2_55 = arith.constant 2 : index
    %91 = memref.load %arg1[%c3_54, %c2_55] : memref<4x5xi32, #tpu.memory_space<smem>>
    %92 = vector.broadcast %91 : i32 to vector<1x256xi32>
    %93 = arith.cmpi sge, %5, %92 : vector<1x256xi32>
    %94 = arith.andi %90, %93 : vector<1x256xi1>
    %c3_56 = arith.constant 3 : index
    %c3_57 = arith.constant 3 : index
    %95 = memref.load %arg1[%c3_56, %c3_57] : memref<4x5xi32, #tpu.memory_space<smem>>
    %96 = vector.broadcast %95 : i32 to vector<1x256xi32>
    %97 = arith.cmpi slt, %5, %96 : vector<1x256xi32>
    %98 = arith.andi %94, %97 : vector<1x256xi1>
    %cst_58 = arith.constant 0.000000e+00 : bf16
    %99 = vector.broadcast %cst_58 : bf16 to vector<8x256xbf16>
    %100 = vector.shape_cast %98 : vector<1x256xi1> to vector<1x256xi1>
    %101 = vector.broadcast %100 : vector<1x256xi1> to vector<8x256xi1>
    %102 = arith.select %101, %3, %99 : vector<8x256xi1>, vector<8x256xbf16>
    %c3_59 = arith.constant 3 : index
    %c0_60 = arith.constant 0 : index
    %c0_61 = arith.constant 0 : index
    %103 = vector.load %arg6[%c3_59, %c0_60, %c0_61] : memref<4x8x8xf32, #tpu.memory_space<vmem>>, vector<1x8x8xf32>
    %104 = vector.shape_cast %103 : vector<1x8x8xf32> to vector<8x8xf32>
    %cst_62 = arith.constant dense<0.000000e+00> : vector<8x8xf32>
    %105 = tpu.matmul %102, %3, %cst_62 {dimension_numbers = #tpu.dot_dimension_numbers<[1], [1], [0], [0], [0, 0, 1, 0], [], []>} : vector<8x256xbf16>, vector<8x256xbf16>, vector<8x8xf32> -> vector<8x8xf32>
    %106 = arith.addf %104, %105 : vector<8x8xf32>
    %c3_63 = arith.constant 3 : index
    %c0_64 = arith.constant 0 : index
    %c0_65 = arith.constant 0 : index
    %107 = vector.load %arg6[%c3_63, %c0_64, %c0_65] : memref<4x8x8xf32, #tpu.memory_space<vmem>>, vector<1x8x8xf32>
    %108 = vector.shape_cast %107 : vector<1x8x8xf32> to vector<8x8xf32>
    %109 = vector.shape_cast %106 : vector<8x8xf32> to vector<1x8x8xf32>
    tpu.vector_store %arg6[%c3_63, %c0_64, %c0_65], %109 {strides = array<i32>} : memref<4x8x8xf32, #tpu.memory_space<vmem>>, vector<1x8x8xf32>,
    %c0_i32_66 = arith.constant 0 : i32
    %110 = arith.cmpi eq, %arg0, %c0_i32_66 : i32
    %111 = arith.extui %110 : i1 to i32
    %c0_i32_67 = arith.constant 0 : i32
    %112 = arith.cmpi ne, %111, %c0_i32_67 : i32
    scf.if %112 {
      %c0_68 = arith.constant 0 : index
      %c4 = arith.constant 4 : index
      %113 = memref.load %arg1[%c0_68, %c4] : memref<4x5xi32, #tpu.memory_space<smem>>
      %114 = arith.sitofp %113 : i32 to f32
      %cst_69 = arith.constant 1.000000e+00 : f32
      %115 = arith.divf %cst_69, %114 : f32
      %c0_70 = arith.constant 0 : index
      %c0_71 = arith.constant 0 : index
      %c0_72 = arith.constant 0 : index
      %116 = vector.load %arg6[%c0_70, %c0_71, %c0_72] : memref<4x8x8xf32, #tpu.memory_space<vmem>>, vector<1x8x8xf32>
      %117 = vector.shape_cast %116 : vector<1x8x8xf32> to vector<8x8xf32>
      %118 = vector.broadcast %115 : f32 to vector<8x8xf32>
      %119 = arith.mulf %117, %118 : vector<8x8xf32>
      %c0_73 = arith.constant 0 : index
      %c0_74 = arith.constant 0 : index
      %c0_75 = arith.constant 0 : index
      %120 = vector.load %arg5[%c0_73, %c0_74, %c0_75] : memref<4x8x8xf32, #tpu.memory_space<vmem>>, vector<1x8x8xf32>
      %121 = vector.shape_cast %120 : vector<1x8x8xf32> to vector<8x8xf32>
      %122 = vector.shape_cast %119 : vector<8x8xf32> to vector<1x8x8xf32>
      tpu.vector_store %arg5[%c0_73, %c0_74, %c0_75], %122 {strides = array<i32>} : memref<4x8x8xf32, #tpu.memory_space<vmem>>, vector<1x8x8xf32>,
      %c1_76 = arith.constant 1 : index
      %c4_77 = arith.constant 4 : index
      %123 = memref.load %arg1[%c1_76, %c4_77] : memref<4x5xi32, #tpu.memory_space<smem>>
      %124 = arith.sitofp %123 : i32 to f32
      %cst_78 = arith.constant 1.000000e+00 : f32
      %125 = arith.divf %cst_78, %124 : f32
      %c1_79 = arith.constant 1 : index
      %c0_80 = arith.constant 0 : index
      %c0_81 = arith.constant 0 : index
      %126 = vector.load %arg6[%c1_79, %c0_80, %c0_81] : memref<4x8x8xf32, #tpu.memory_space<vmem>>, vector<1x8x8xf32>
      %127 = vector.shape_cast %126 : vector<1x8x8xf32> to vector<8x8xf32>
      %128 = vector.broadcast %125 : f32 to vector<8x8xf32>
      %129 = arith.mulf %127, %128 : vector<8x8xf32>
      %c1_82 = arith.constant 1 : index
      %c0_83 = arith.constant 0 : index
      %c0_84 = arith.constant 0 : index
      %130 = vector.load %arg5[%c1_82, %c0_83, %c0_84] : memref<4x8x8xf32, #tpu.memory_space<vmem>>, vector<1x8x8xf32>
      %131 = vector.shape_cast %130 : vector<1x8x8xf32> to vector<8x8xf32>
      %132 = vector.shape_cast %129 : vector<8x8xf32> to vector<1x8x8xf32>
      tpu.vector_store %arg5[%c1_82, %c0_83, %c0_84], %132 {strides = array<i32>} : memref<4x8x8xf32, #tpu.memory_space<vmem>>, vector<1x8x8xf32>,
      %c2_85 = arith.constant 2 : index
      %c4_86 = arith.constant 4 : index
      %133 = memref.load %arg1[%c2_85, %c4_86] : memref<4x5xi32, #tpu.memory_space<smem>>
      %134 = arith.sitofp %133 : i32 to f32
      %cst_87 = arith.constant 1.000000e+00 : f32
      %135 = arith.divf %cst_87, %134 : f32
      %c2_88 = arith.constant 2 : index
      %c0_89 = arith.constant 0 : index
      %c0_90 = arith.constant 0 : index
      %136 = vector.load %arg6[%c2_88, %c0_89, %c0_90] : memref<4x8x8xf32, #tpu.memory_space<vmem>>, vector<1x8x8xf32>
      %137 = vector.shape_cast %136 : vector<1x8x8xf32> to vector<8x8xf32>
      %138 = vector.broadcast %135 : f32 to vector<8x8xf32>
      %139 = arith.mulf %137, %138 : vector<8x8xf32>
      %c2_91 = arith.constant 2 : index
      %c0_92 = arith.constant 0 : index
      %c0_93 = arith.constant 0 : index
      %140 = vector.load %arg5[%c2_91, %c0_92, %c0_93] : memref<4x8x8xf32, #tpu.memory_space<vmem>>, vector<1x8x8xf32>
      %141 = vector.shape_cast %140 : vector<1x8x8xf32> to vector<8x8xf32>
      %142 = vector.shape_cast %139 : vector<8x8xf32> to vector<1x8x8xf32>
      tpu.vector_store %arg5[%c2_91, %c0_92, %c0_93], %142 {strides = array<i32>} : memref<4x8x8xf32, #tpu.memory_space<vmem>>, vector<1x8x8xf32>,
      %c3_94 = arith.constant 3 : index
      %c4_95 = arith.constant 4 : index
      %143 = memref.load %arg1[%c3_94, %c4_95] : memref<4x5xi32, #tpu.memory_space<smem>>
      %144 = arith.sitofp %143 : i32 to f32
      %cst_96 = arith.constant 1.000000e+00 : f32
      %145 = arith.divf %cst_96, %144 : f32
      %c3_97 = arith.constant 3 : index
      %c0_98 = arith.constant 0 : index
      %c0_99 = arith.constant 0 : index
      %146 = vector.load %arg6[%c3_97, %c0_98, %c0_99] : memref<4x8x8xf32, #tpu.memory_space<vmem>>, vector<1x8x8xf32>
      %147 = vector.shape_cast %146 : vector<1x8x8xf32> to vector<8x8xf32>
      %148 = vector.broadcast %145 : f32 to vector<8x8xf32>
      %149 = arith.mulf %147, %148 : vector<8x8xf32>
      %c3_100 = arith.constant 3 : index
      %c0_101 = arith.constant 0 : index
      %c0_102 = arith.constant 0 : index
      %150 = vector.load %arg5[%c3_100, %c0_101, %c0_102] : memref<4x8x8xf32, #tpu.memory_space<vmem>>, vector<1x8x8xf32>
      %151 = vector.shape_cast %150 : vector<1x8x8xf32> to vector<8x8xf32>
      %152 = vector.shape_cast %149 : vector<8x8xf32> to vector<1x8x8xf32>
      tpu.vector_store %arg5[%c3_100, %c0_101, %c0_102], %152 {strides = array<i32>} : memref<4x8x8xf32, #tpu.memory_space<vmem>>, vector<1x8x8xf32>,
    } else {
    }
    return
  }
  func.func @transform_0(%arg0: i32, %arg1: memref<4x5xi32, #tpu.memory_space<smem>>) -> (i32, i32) {
    %c0_i32 = arith.constant 0 : i32
    %c0_i32_0 = arith.constant 0 : i32
    return %c0_i32, %arg0 : i32, i32
  }
  func.func @transform_1(%arg0: i32, %arg1: memref<4x5xi32, #tpu.memory_space<smem>>) -> (i32, i32) {
    %c0_i32 = arith.constant 0 : i32
    %c0_i32_0 = arith.constant 0 : i32
    return %c0_i32, %arg0 : i32, i32
  }
  func.func @transform_2(%arg0: i32, %arg1: memref<4x5xi32, #tpu.memory_space<smem>>) -> (i32, i32) {
    %c0_i32 = arith.constant 0 : i32
    %c0_i32_0 = arith.constant 0 : i32
    return %c0_i32, %arg0 : i32, i32
  }
  func.func @transform_3(%arg0: i32, %arg1: memref<4x5xi32, #tpu.memory_space<smem>>) -> (i32, i32, i32) {
    %c0_i32 = arith.constant 0 : i32
    %c0_i32_0 = arith.constant 0 : i32
    %c0_i32_1 = arith.constant 0 : i32
    %c0_i32_2 = arith.constant 0 : i32
    return %c0_i32, %c0_i32_0, %c0_i32_1 : i32, i32, i32
  }
}

</mosaic_0001>

<llo_original>
// kernel: tpu_custom_call.1
$region0: #{tpu_custom_call.1}
  #allocation0 [shape = 'u32[]', space=smem, size = 0x4, offset = 0x4, fixed_abs, tag = 'smem constant byte address 0x4 - core index']
  #allocation1 [shape = 'u32[72,128]{1,0:T(1,128)}', space=vmem, size = 0x9000, scoped, tag = 'internal scratch']
  #allocation2 [shape = 'f32[4,8,8]{2,1,0:T(8,128)}', space=vmem, size = 0x4000, scoped, tag = 'scratch operand']
  #allocation3 [shape = 's32[1]{0}', space=sflag, size = 0x4, scoped, tag = 'scoped memory for tpu_custom_call.1']
  #allocation4 [shape = 'u8[2048]{0}', space=smem, size = 0x800, scoped, tag = 'prefetched SMEM operand 0']
  %s0 = inlined_call_operand.hbm [shape: s32[4,5], index: 0, kind: input, shape index: {}]
  %s1 = inlined_call_operand.hbm [shape: bf16[8,256], index: 1, kind: input, shape index: {}]
  %s2 = inlined_call_operand.hbm [shape: s32[1,256], index: 2, kind: input, shape index: {}]
  %s3 = inlined_call_operand.vmem [shape: s32[1,256], index: 3, kind: input, shape index: {}]
  %s4 = inlined_call_operand.hbm [shape: f32[4,8,8], index: 4, kind: output, shape index: {}]
  %s5 = sld [smem:[#allocation0]]
  $region38: #{tpu_custom_call.1} parent=0
    _
  %s7 = ssub.s32 1, %s5
  %s8 = scalar_select 0, %s7, %s5
  %s10 = sshll.u32 %s0, 4
  %s11 = int_to_ptr.hbm [resolvable:$true] %s10
  %13 = dma.hbm_to_smem %s11, 64, [#allocation4], [#allocation3]
  %15 = dma.done [#allocation3], 64
  %16 = sfence
  $region1: #{tpu_custom_call.1} parent=0
    #allocation5 [shape = 'u8[4096]{0}', space=vmem, size = 0x1000, scoped, tag = 'input window, operand 1, single buffered']
    #allocation6 [shape = 's32[1]{0}', space=sflag, size = 0x4, scoped, tag = 'scoped memory for tpu_custom_call.1']
    #allocation7 [shape = 's32[1]{0}', space=sflag, size = 0x4, scoped, tag = 'scoped memory for tpu_custom_call.1']
    #allocation8 [shape = 'u8[1024]{0}', space=vmem, size = 0x400, scoped, tag = 'input window, operand 2, single buffered']
    #allocation9 [shape = 's32[1]{0}', space=sflag, size = 0x4, scoped, tag = 'scoped memory for tpu_custom_call.1']
    #allocation10 [shape = 'u8[16384]{0}', space=vmem, size = 0x4000, scoped, tag = 'output window, operand 0, single buffered']
    %17 = vsyncpa [#allocation6], 0
    %18 = vsyncpa [#allocation9], 0
    %19 = vsyncpa [#allocation7], 0
    // Predicated region
    $region2: #{tpu_custom_call.1} parent=1 // pred_check
      _
    $region3: #{tpu_custom_call.1} parent=1 // pred_check_branch
      %21 = sbr.rel (0) target = $region5
    $region4: #{tpu_custom_call.1} parent=1 // pred_region
      %23 = vsyncadd [#allocation6], 0
      %s25 = sshll.u32 %s1, 4
      %s26 = int_to_ptr.hbm [resolvable:$true] %s25
      %s27 = sshll.u32 [#allocation5], 4
      %s28 = int_to_ptr.vmem [resolvable:$true] %s27
      %30 = dma.hbm_to_vmem [thread:$0]  %s26, 128, %s28, [#allocation6]
    $region5: #{tpu_custom_call.1} parent=1 // pred_fallthru
      _
    // Predicated region
    $region6: #{tpu_custom_call.1} parent=1 // pred_check
      _
    $region7: #{tpu_custom_call.1} parent=1 // pred_check_branch
      %32 = sbr.rel (0) target = $region9
    $region8: #{tpu_custom_call.1} parent=1 // pred_region
      %34 = vsyncadd [#allocation9], 0
      %s36 = sshll.u32 %s2, 4
      %s37 = int_to_ptr.hbm [resolvable:$true] %s36
      %s38 = sshll.u32 [#allocation8], 4
      %s39 = int_to_ptr.vmem [resolvable:$true] %s38
      %41 = dma.hbm_to_vmem [thread:$0]  %s37, 32, %s39, [#allocation9]
    $region9: #{tpu_custom_call.1} parent=1 // pred_fallthru
      _
    // Predicated region
    $region10: #{tpu_custom_call.1} parent=1 // pred_check
      _
    $region11: #{tpu_custom_call.1} parent=1 // pred_check_branch
      %43 = sbr.rel (0) target = $region13
    $region12: #{tpu_custom_call.1} parent=1 // pred_region
      _
    $region13: #{tpu_custom_call.1} parent=1 // pred_fallthru
      _
    // Predicated region
    $region14: #{tpu_custom_call.1} parent=1 // pred_check
      _
    $region15: #{tpu_custom_call.1} parent=1 // pred_check_branch
      %45 = sbr.rel (0) target = $region17
    $region16: #{tpu_custom_call.1} parent=1 // pred_region
      %47 = dma.done [#allocation6], 128
    $region17: #{tpu_custom_call.1} parent=1 // pred_fallthru
      _
    // Predicated region
    $region18: #{tpu_custom_call.1} parent=1 // pred_check
      _
    $region19: #{tpu_custom_call.1} parent=1 // pred_check_branch
      %49 = sbr.rel (0) target = $region21
    $region20: #{tpu_custom_call.1} parent=1 // pred_region
      %51 = dma.done [#allocation9], 32
    $region21: #{tpu_custom_call.1} parent=1 // pred_fallthru
      _
    %p53 = scmp.eq.s32.totalorder 0, 0
    // Predicated region
    $region22: #{tpu_custom_call.1} parent=1 // pred_check
      %p54 = pneg %p53
    $region23: #{tpu_custom_call.1} parent=1 // pred_check_branch
      %56 = sbr.rel (%p54) target = $region25
    $region24: #{tpu_custom_call.1} parent=1 // pred_region
      %vm57 = vcmask 64512
      %58 = vst.msk [vmem:[#allocation2] sm:$0xff] %vm57, 0.0
      %59 = vst.msk [vmem:[#allocation2 + $0x8] sm:$0xff] %vm57, 0.0
      %60 = vst.msk [vmem:[#allocation2 + $0x10] sm:$0xff] %vm57, 0.0
      %61 = vst.msk [vmem:[#allocation2 + $0x18] sm:$0xff] %vm57, 0.0
    $region25: #{tpu_custom_call.1} parent=1 // pred_fallthru
      _
    %v62 = vld [vmem:[#allocation5] sm:$0xff]
    %v63 = vld [vmem:[#allocation8] sm:$0x3]
    %v64 = vld [vmem:[%s3] sm:$0x3]
    %s65 = sld [smem:[#allocation4]]
    %v66 = vstv %s65
    %vm67 = vcmp.ge.s32.totalorder %v63, %v66
    %s68 = sld [smem:[#allocation4 + $0x1]]
    %v69 = vstv %s68
    %vm70 = vcmp.lt.s32.totalorder %v63, %v69
    %vm71 = vmand %vm67, %vm70
    %s72 = sld [smem:[#allocation4 + $0x2]]
    %v73 = vstv %s72
    %vm74 = vcmp.ge.s32.totalorder %v64, %v73
    %vm75 = vmand %vm71, %vm74
    %s76 = sld [smem:[#allocation4 + $0x3]]
    %v77 = vstv %s76
    %vm78 = vcmp.lt.s32.totalorder %v64, %v77
    %vm79 = vmand %vm75, %vm78
    %v80 = vsel %vm79, 1, 0
    %v81 = vperm.slane %v80, 0
    %v82 = vperm.slane %v80, 1
    %vm83 = vcmp.eq.s32.totalorder %v81, 1
    %vm84 = vcmp.eq.s32.totalorder %v82, 1
    %vm85 = vmpackc.low %vm84, %vm83
    %v86 = vsel %vm85, %v62, 0
    %v87 = vld [vmem:[#allocation2] sm:$0xff]
    %v89 = vunpack.c.l.b16 %v86
    %v90 = vunpack.c.h.b16 %v86
    %v91 = vpack.c.b16 %v89, %v89
    %v92 = vpack.c.b16 %v90, %v90
    %v96 = vunpack.c.l.b16 %v62
    %v97 = vunpack.c.h.b16 %v62
    %v98 = vpack.c.b16 %v96, %v96
    %v99 = vpack.c.b16 %v97, %v97
    %102 = vmatpush.bf16.xpose.msra.mxu0 0
    %103 = vmatpush.bf16.xpose.msra.mxu0 0
    %104 = vmatpush.bf16.xpose.msra.mxu0 0
    %105 = vmatpush.bf16.xpose.msra.mxu0 0
    %106 = vmatpush.bf16.xpose.msra.mxu0 0
    %107 = vmatpush.bf16.xpose.msra.mxu0 0
    %108 = vmatpush.bf16.xpose.msra.mxu0 0
    %109 = vmatpush.bf16.xpose.msra.mxu0 %v98
    %110 = vmatmul.bf16.gmra.mxu0 %v91
    %v111 = vpop.f32.mrf.mxu0
    %v112 = vadd.f32 0.0, %v111
    %v113 = vpop.f32.mrf.mxu0
    %114 = vdwg.mxu0
    %115 = vmatpush.bf16.xpose.msra.mxu0 0
    %116 = vmatpush.bf16.xpose.msra.mxu0 0
    %117 = vmatpush.bf16.xpose.msra.mxu0 0
    %118 = vmatpush.bf16.xpose.msra.mxu0 0
    %119 = vmatpush.bf16.xpose.msra.mxu0 0
    %120 = vmatpush.bf16.xpose.msra.mxu0 0
    %121 = vmatpush.bf16.xpose.msra.mxu0 0
    %122 = vmatpush.bf16.xpose.msra.mxu0 %v99
    %123 = vmatmul.bf16.gmra.mxu0 %v92
    %v124 = vpop.f32.mrf.mxu0
    %v125 = vadd.f32 %v112, %v124
    %v126 = vpop.f32.mrf.mxu0
    %127 = vdwg.mxu0
    %v128 = vadd.f32 %v87, %v125
    %vm129 = vcmask 64512
    %130 = vst.msk [vmem:[#allocation2] sm:$0xff] %vm129, %v128
    %s131 = sld [smem:[#allocation4 + $0x80]]
    %v132 = vstv %s131
    %vm133 = vcmp.ge.s32.totalorder %v63, %v132
    %s134 = sld [smem:[#allocation4 + $0x81]]
    %v135 = vstv %s134
    %vm136 = vcmp.lt.s32.totalorder %v63, %v135
    %vm137 = vmand %vm133, %vm136
    %s138 = sld [smem:[#allocation4 + $0x82]]
    %v139 = vstv %s138
    %vm140 = vcmp.ge.s32.totalorder %v64, %v139
    %vm141 = vmand %vm137, %vm140
    %s142 = sld [smem:[#allocation4 + $0x83]]
    %v143 = vstv %s142
    %vm144 = vcmp.lt.s32.totalorder %v64, %v143
    %vm145 = vmand %vm141, %vm144
    %v146 = vsel %vm145, 1, 0
    %v147 = vperm.slane %v146, 0
    %v148 = vperm.slane %v146, 1
    %vm149 = vcmp.eq.s32.totalorder %v147, 1
    %vm150 = vcmp.eq.s32.totalorder %v148, 1
    %vm151 = vmpackc.low %vm150, %vm149
    %v152 = vsel %vm151, %v62, 0
    %s153 = scalar_lea.vmem [#allocation2], 8
    %v154 = vld [vmem:[%s153] sm:$0xff]
    %v156 = vunpack.c.l.b16 %v152
    %v157 = vunpack.c.h.b16 %v152
    %v158 = vpack.c.b16 %v156, %v156
    %v159 = vpack.c.b16 %v157, %v157
    %162 = vmatpush.bf16.xpose.msra.mxu0 0
    %163 = vmatpush.bf16.xpose.msra.mxu0 0
    %164 = vmatpush.bf16.xpose.msra.mxu0 0
    %165 = vmatpush.bf16.xpose.msra.mxu0 0
    %166 = vmatpush.bf16.xpose.msra.mxu0 0
    %167 = vmatpush.bf16.xpose.msra.mxu0 0
    %168 = vmatpush.bf16.xpose.msra.mxu0 0
    %169 = vmatpush.bf16.xpose.msra.mxu0 %v98
    %170 = vmatmul.bf16.gmra.mxu0 %v158
    %v171 = vpop.f32.mrf.mxu0
    %v172 = vadd.f32 0.0, %v171
    %v173 = vpop.f32.mrf.mxu0
    %174 = vdwg.mxu0
    %175 = vmatpush.bf16.xpose.msra.mxu0 0
    %176 = vmatpush.bf16.xpose.msra.mxu0 0
    %177 = vmatpush.bf16.xpose.msra.mxu0 0
    %178 = vmatpush.bf16.xpose.msra.mxu0 0
    %179 = vmatpush.bf16.xpose.msra.mxu0 0
    %180 = vmatpush.bf16.xpose.msra.mxu0 0
    %181 = vmatpush.bf16.xpose.msra.mxu0 0
    %182 = vmatpush.bf16.xpose.msra.mxu0 %v99
    %183 = vmatmul.bf16.gmra.mxu0 %v159
    %v184 = vpop.f32.mrf.mxu0
    %v185 = vadd.f32 %v172, %v184
    %v186 = vpop.f32.mrf.mxu0
    %187 = vdwg.mxu0
    %v188 = vadd.f32 %v154, %v185
    %189 = vst.msk [vmem:[%s153] sm:$0xff] %vm129, %v188
    %s190 = sld [smem:[#allocation4 + $0x100]]
    %v191 = vstv %s190
    %vm192 = vcmp.ge.s32.totalorder %v63, %v191
    %s193 = sld [smem:[#allocation4 + $0x101]]
    %v194 = vstv %s193
    %vm195 = vcmp.lt.s32.totalorder %v63, %v194
    %vm196 = vmand %vm192, %vm195
    %s197 = sld [smem:[#allocation4 + $0x102]]
    %v198 = vstv %s197
    %vm199 = vcmp.ge.s32.totalorder %v64, %v198
    %vm200 = vmand %vm196, %vm199
    %s201 = sld [smem:[#allocation4 + $0x103]]
    %v202 = vstv %s201
    %vm203 = vcmp.lt.s32.totalorder %v64, %v202
    %vm204 = vmand %vm200, %vm203
    %v205 = vsel %vm204, 1, 0
    %v206 = vperm.slane %v205, 0
    %v207 = vperm.slane %v205, 1
    %vm208 = vcmp.eq.s32.totalorder %v206, 1
    %vm209 = vcmp.eq.s32.totalorder %v207, 1
    %vm210 = vmpackc.low %vm209, %vm208
    %v211 = vsel %vm210, %v62, 0
    %s212 = scalar_lea.vmem [#allocation2], 16
    %v213 = vld [vmem:[%s212] sm:$0xff]
    %v215 = vunpack.c.l.b16 %v211
    %v216 = vunpack.c.h.b16 %v211
    %v217 = vpack.c.b16 %v215, %v215
    %v218 = vpack.c.b16 %v216, %v216
    %221 = vmatpush.bf16.xpose.msra.mxu0 0
    %222 = vmatpush.bf16.xpose.msra.mxu0 0
    %223 = vmatpush.bf16.xpose.msra.mxu0 0
    %224 = vmatpush.bf16.xpose.msra.mxu0 0
    %225 = vmatpush.bf16.xpose.msra.mxu0 0
    %226 = vmatpush.bf16.xpose.msra.mxu0 0
    %227 = vmatpush.bf16.xpose.msra.mxu0 0
    %228 = vmatpush.bf16.xpose.msra.mxu0 %v98
    %229 = vmatmul.bf16.gmra.mxu0 %v217
    %v230 = vpop.f32.mrf.mxu0
    %v231 = vadd.f32 0.0, %v230
    %v232 = vpop.f32.mrf.mxu0
    %233 = vdwg.mxu0
    %234 = vmatpush.bf16.xpose.msra.mxu0 0
    %235 = vmatpush.bf16.xpose.msra.mxu0 0
    %236 = vmatpush.bf16.xpose.msra.mxu0 0
    %237 = vmatpush.bf16.xpose.msra.mxu0 0
    %238 = vmatpush.bf16.xpose.msra.mxu0 0
    %239 = vmatpush.bf16.xpose.msra.mxu0 0
    %240 = vmatpush.bf16.xpose.msra.mxu0 0
    %241 = vmatpush.bf16.xpose.msra.mxu0 %v99
    %242 = vmatmul.bf16.gmra.mxu0 %v218
    %v243 = vpop.f32.mrf.mxu0
    %v244 = vadd.f32 %v231, %v243
    %v245 = vpop.f32.mrf.mxu0
    %246 = vdwg.mxu0
    %v247 = vadd.f32 %v213, %v244
    %248 = vst.msk [vmem:[%s212] sm:$0xff] %vm129, %v247
    %s249 = sld [smem:[#allocation4 + $0x180]]
    %v250 = vstv %s249
    %vm251 = vcmp.ge.s32.totalorder %v63, %v250
    %s252 = sld [smem:[#allocation4 + $0x181]]
    %v253 = vstv %s252
    %vm254 = vcmp.lt.s32.totalorder %v63, %v253
    %vm255 = vmand %vm251, %vm254
    %s256 = sld [smem:[#allocation4 + $0x182]]
    %v257 = vstv %s256
    %vm258 = vcmp.ge.s32.totalorder %v64, %v257
    %vm259 = vmand %vm255, %vm258
    %s260 = sld [smem:[#allocation4 + $0x183]]
    %v261 = vstv %s260
    %vm262 = vcmp.lt.s32.totalorder %v64, %v261
    %vm263 = vmand %vm259, %vm262
    %v264 = vsel %vm263, 1, 0
    %v265 = vperm.slane %v264, 0
    %v266 = vperm.slane %v264, 1
    %vm267 = vcmp.eq.s32.totalorder %v265, 1
    %vm268 = vcmp.eq.s32.totalorder %v266, 1
    %vm269 = vmpackc.low %vm268, %vm267
    %v270 = vsel %vm269, %v62, 0
    %s271 = scalar_lea.vmem [#allocation2], 24
    %v272 = vld [vmem:[%s271] sm:$0xff]
    %v274 = vunpack.c.l.b16 %v270
    %v275 = vunpack.c.h.b16 %v270
    %v276 = vpack.c.b16 %v274, %v274
    %v277 = vpack.c.b16 %v275, %v275
    %280 = vmatpush.bf16.xpose.msra.mxu0 0
    %281 = vmatpush.bf16.xpose.msra.mxu0 0
    %282 = vmatpush.bf16.xpose.msra.mxu0 0
    %283 = vmatpush.bf16.xpose.msra.mxu0 0
    %284 = vmatpush.bf16.xpose.msra.mxu0 0
    %285 = vmatpush.bf16.xpose.msra.mxu0 0
    %286 = vmatpush.bf16.xpose.msra.mxu0 0
    %287 = vmatpush.bf16.xpose.msra.mxu0 %v98
    %288 = vmatmul.bf16.gmra.mxu0 %v276
    %v289 = vpop.f32.mrf.mxu0
    %v290 = vadd.f32 0.0, %v289
    %v291 = vpop.f32.mrf.mxu0
    %292 = vdwg.mxu0
    %293 = vmatpush.bf16.xpose.msra.mxu0 0
    %294 = vmatpush.bf16.xpose.msra.mxu0 0
    %295 = vmatpush.bf16.xpose.msra.mxu0 0
    %296 = vmatpush.bf16.xpose.msra.mxu0 0
    %297 = vmatpush.bf16.xpose.msra.mxu0 0
    %298 = vmatpush.bf16.xpose.msra.mxu0 0
    %299 = vmatpush.bf16.xpose.msra.mxu0 0
    %300 = vmatpush.bf16.xpose.msra.mxu0 %v99
    %301 = vmatmul.bf16.gmra.mxu0 %v277
    %v302 = vpop.f32.mrf.mxu0
    %v303 = vadd.f32 %v290, %v302
    %v304 = vpop.f32.mrf.mxu0
    %305 = vdwg.mxu0
    %v306 = vadd.f32 %v272, %v303
    %307 = vst.msk [vmem:[%s271] sm:$0xff] %vm129, %v306
    // Predicated region
    $region26: #{tpu_custom_call.1} parent=1 // pred_check
      %p308 = pneg %p53
    $region27: #{tpu_custom_call.1} parent=1 // pred_check_branch
      %310 = sbr.rel (%p308) target = $region29
    $region28: #{tpu_custom_call.1} parent=1 // pred_region
      %s311 = sld [smem:[#allocation4 + $0x4]]
      %s312 = scvt.s32.f32 %s311
      %v313 = vstv %s312
      %v314 = vrcp.pop %v313
      %v315 = vmul.f32 %v313, %v314
      %v316 = vsub.f32 1.0, %v315
      %v317 = vmul.f32 %v314, %v316
      %v318 = vadd.f32 %v314, %v317
      %vm319 = vweird.f32 %v313
      %vm320 = vweird.f32 %v314
      %vm321 = vmor %vm319, %vm320
      %v322 = vsel %vm321, %v314, %v318
      %v323 = vand.u32 2147483647, %v313
      %vm324 = vcmp.eq.f32.partialorder %v323, 8.507059e+37
      %v325 = vand.u32 %v313, 2147483648
      %v326 = vor.u32 1.1754944e-38, %v325
      %v327 = vsel %vm324, %v326, %v322
      %s328 = vtos %v327
      %v329 = vld [vmem:[#allocation2] sm:$0xff]
      %v330 = vstv %s328
      %v331 = vmul.f32 %v329, %v330
      %332 = vst.msk [vmem:[#allocation10] sm:$0xff] %vm129, %v331
      %s333 = sld [smem:[#allocation4 + $0x84]]
      %s334 = scvt.s32.f32 %s333
      %v335 = vstv %s334
      %v336 = vrcp.pop %v335
      %v337 = vmul.f32 %v335, %v336
      %v338 = vsub.f32 1.0, %v337
      %v339 = vmul.f32 %v336, %v338
      %v340 = vadd.f32 %v336, %v339
      %vm341 = vweird.f32 %v335
      %vm342 = vweird.f32 %v336
      %vm343 = vmor %vm341, %vm342
      %v344 = vsel %vm343, %v336, %v340
      %v345 = vand.u32 2147483647, %v335
      %vm346 = vcmp.eq.f32.partialorder %v345, 8.507059e+37
      %v347 = vand.u32 %v335, 2147483648
      %v348 = vor.u32 1.1754944e-38, %v347
      %v349 = vsel %vm346, %v348, %v344
      %s350 = vtos %v349
      %v351 = vld [vmem:[%s153] sm:$0xff]
      %v352 = vstv %s350
      %v353 = vmul.f32 %v351, %v352
      %s354 = scalar_lea.vmem [#allocation10], 8
      %355 = vst.msk [vmem:[%s354] sm:$0xff] %vm129, %v353
      %s356 = sld [smem:[#allocation4 + $0x104]]
      %s357 = scvt.s32.f32 %s356
      %v358 = vstv %s357
      %v359 = vrcp.pop %v358
      %v360 = vmul.f32 %v358, %v359
      %v361 = vsub.f32 1.0, %v360
      %v362 = vmul.f32 %v359, %v361
      %v363 = vadd.f32 %v359, %v362
      %vm364 = vweird.f32 %v358
      %vm365 = vweird.f32 %v359
      %vm366 = vmor %vm364, %vm365
      %v367 = vsel %vm366, %v359, %v363
      %v368 = vand.u32 2147483647, %v358
      %vm369 = vcmp.eq.f32.partialorder %v368, 8.507059e+37
      %v370 = vand.u32 %v358, 2147483648
      %v371 = vor.u32 1.1754944e-38, %v370
      %v372 = vsel %vm369, %v371, %v367
      %s373 = vtos %v372
      %v374 = vld [vmem:[%s212] sm:$0xff]
      %v375 = vstv %s373
      %v376 = vmul.f32 %v374, %v375
      %s377 = scalar_lea.vmem [#allocation10], 16
      %378 = vst.msk [vmem:[%s377] sm:$0xff] %vm129, %v376
      %s379 = sld [smem:[#allocation4 + $0x184]]
      %s380 = scvt.s32.f32 %s379
      %v381 = vstv %s380
      %v382 = vrcp.pop %v381
      %v383 = vmul.f32 %v381, %v382
      %v384 = vsub.f32 1.0, %v383
      %v385 = vmul.f32 %v382, %v384
      %v386 = vadd.f32 %v382, %v385
      %vm387 = vweird.f32 %v381
      %vm388 = vweird.f32 %v382
      %vm389 = vmor %vm387, %vm388
      %v390 = vsel %vm389, %v382, %v386
      %v391 = vand.u32 2147483647, %v381
      %vm392 = vcmp.eq.f32.partialorder %v391, 8.507059e+37
      %v393 = vand.u32 %v381, 2147483648
      %v394 = vor.u32 1.1754944e-38, %v393
      %v395 = vsel %vm392, %v394, %v390
      %s396 = vtos %v395
      %v397 = vld [vmem:[%s271] sm:$0xff]
      %v398 = vstv %s396
      %v399 = vmul.f32 %v397, %v398
      %s400 = scalar_lea.vmem [#allocation10], 24
      %401 = vst.msk [vmem:[%s400] sm:$0xff] %vm129, %v399
    $region29: #{tpu_custom_call.1} parent=1 // pred_fallthru
      _
    // Predicated region
    $region30: #{tpu_custom_call.1} parent=1 // pred_check
      _
    $region31: #{tpu_custom_call.1} parent=1 // pred_check_branch
      %403 = sbr.rel (0) target = $region33
    $region32: #{tpu_custom_call.1} parent=1 // pred_region
      %405 = vsyncadd [#allocation7], 0
      %s406 = sshll.u32 [#allocation10], 4
      %s407 = int_to_ptr.vmem [resolvable:$true] %s406
      %s408 = sshll.u32 %s4, 4
      %s409 = int_to_ptr.hbm [resolvable:$true] %s408
      %414 = dma.vmem_to_hbm [thread:$0]  %s407, 512, %s409, [#allocation7], 128, 128, 8
    $region33: #{tpu_custom_call.1} parent=1 // pred_fallthru
      _
    // Predicated region
    $region34: #{tpu_custom_call.1} parent=1 // pred_check
      _
    $region35: #{tpu_custom_call.1} parent=1 // pred_check_branch
      %416 = sbr.rel (0) target = $region37
    $region36: #{tpu_custom_call.1} parent=1 // pred_region
      %418 = dma.done [#allocation7], 512
    $region37: #{tpu_custom_call.1} parent=1 // pred_fallthru
      _
    %419 = vsyncpa [#allocation6], 1
    %420 = vsyncpa [#allocation9], 1
    %421 = vsyncpa [#allocation7], 1

</llo_original>
